<compile_context>
chip_gen: v5e
topology: v5e:2x2
jax: 0.10.0
libtpu: 0.0.40
codegen_flags: <defaults>
</compile_context>

<pallas_src>
import functools

import jax
import jax.numpy as jnp
from jax.experimental import pallas as pl
from jax.experimental.pallas import tpu as pltpu

_BN_EPS = 1e-5


def _infomax_ica_kernel(x_ref, wt_ref, pr_ref, o_ref, sum_ref, ssq_ref,
                        *slab_refs, inv_batch, use_slab):
    """Fused Linear + BatchNorm1d (batch statistics), two streaming passes.

    Grid = (feature tiles, pass, batch tiles).  Block shapes per step:
      x_ref   : (tb, n_in)    input rows, f32 (cast to bf16 at the MXU)
      wt_ref  : (n_in, tn)    W1.weight^T slice, bf16 (pre-transposed)
      pr_ref  : (8, tn)       row 0 = BN gamma, row 1 = BN beta
      o_ref   : (tb, tn)      output tile, f32
      sum_ref : (1, tn)       scratch: sum(y)   -> reused as BN `scale` in pass 1
      ssq_ref : (1, tn)       scratch: sum(y*y) -> reused as BN `shift` in pass 1
      slab_refs (optional): (nb, tb, tn) f32 slab holding y for pass 1.
    """
    p = pl.program_id(1)   # 0: accumulate batch statistics, 1: normalize+store
    i = pl.program_id(2)   # batch tile index

    def linear():
        # Linear WITHOUT bias: a constant per-feature shift is removed exactly
        # by BatchNorm's batch-mean subtraction.  bf16 x bf16 -> f32 acc (MXU).
        return jnp.dot(x_ref[...].astype(jnp.bfloat16), wt_ref[...],
                       preferred_element_type=jnp.float32)

    @pl.when(p == 0)
    def _stats_pass():
        y = linear()

        @pl.when(i == 0)
        def _init():
            sum_ref[...] = jnp.zeros_like(sum_ref)
            ssq_ref[...] = jnp.zeros_like(ssq_ref)

        sum_ref[...] = sum_ref[...] + jnp.sum(y, axis=0, keepdims=True)
        ssq_ref[...] = ssq_ref[...] + jnp.sum(y * y, axis=0, keepdims=True)

        if use_slab:
            slab_refs[0][i] = y          # cache y; no recompute in pass 1

    @pl.when(p == 1)
    def _normalize_pass():
        @pl.when(i == 0)
        def _finalize_stats():
            # Hoisted: once per feature tile; scratch is reused to hold the
            # folded BN scale / shift for the remaining batch tiles.
            mean = sum_ref[...] * inv_batch
            var = jnp.maximum(ssq_ref[...] * inv_batch - mean * mean, 0.0)
            inv_std = jax.lax.rsqrt(var + _BN_EPS)
            scale = pr_ref[0:1, :] * inv_std
            shift = pr_ref[1:2, :] - mean * scale
            sum_ref[...] = scale
            ssq_ref[...] = shift

        if use_slab:
            y = slab_refs[0][i]
        else:
            y = linear()                 # fallback: recompute (x re-streamed)
        o_ref[...] = (y * sum_ref[...] + ssq_ref[...]).astype(o_ref.dtype)


def _round_up(x, m):
    return ((x + m - 1) // m) * m


def _vmem_budget_bytes():
    cap = 64 << 20                       # conservative default (v7x per-TC VMEM)
    try:
        cap = int(pltpu.get_tpu_info().vmem_capacity_bytes)
    except Exception:
        pass
    # ~75% of physical VMEM, capped at 100 MiB (v5e/v6e 128 MiB -> 96 MiB,
    # v7x 64 MiB -> 48 MiB).
    return min(cap * 3 // 4, 100 << 20)


def infomax_ica_forward(x, W, b=None, gamma=None, beta=None, *,
                        block_b=512, block_n=256, use_slab=None):
    """x: (B, n_in); W: (n_out, n_in) PyTorch Linear layout; b/gamma/beta: (n_out,).

    `b` (Linear bias) is accepted for API parity but unused: BatchNorm1d with
    batch statistics removes any constant per-feature shift exactly.
    """
    del b
    B, n_in = x.shape
    n_out, n_in_w = W.shape
    assert n_in == n_in_w, "weight / input feature mismatch"

    gamma = jnp.ones((n_out,), jnp.float32) if gamma is None else gamma
    beta = jnp.zeros((n_out,), jnp.float32) if beta is None else beta

    # ---- Feature tiling: lane-dense (multiple of 128); aim for >= 2 feature
    # tiles whenever the padded feature dim allows (v7x megacore occupancy).
    n_out_128 = _round_up(n_out, 128)
    tn = min(max(128, (block_n // 128) * 128), n_out_128)
    if n_out_128 >= 256:
        tn = min(tn, max(128, ((n_out_128 // 2) // 128) * 128))
    n_out_pad = _round_up(n_out, tn)
    nj = n_out_pad // tn

    # ---- Batch tiling + VMEM planning (adaptive, fails loudly if impossible).
    budget = _vmem_budget_bytes()
    tb0 = max(8, (min(block_b, _round_up(B, 8)) // 8) * 8)

    def vmem_estimate(tb, slab, b_pad):
        est = 2 * tb * n_in * 4          # x blocks (f32, double-buffered)
        est += 2 * n_in * tn * 2         # W^T blocks (bf16)
        est += 2 * 8 * tn * 4            # gamma/beta block
        est += 2 * tb * tn * 4           # output blocks
        est += 2 * 8 * tn * 4            # sum / ssq scratch (8-sublane padded)
        if slab:
            est += b_pad * tn * 4        # y slab
        return est + (2 << 20)           # headroom

    slab = True if use_slab is None else bool(use_slab)
    tb = tb0
    while True:
        B_pad = _round_up(B, tb)
        if vmem_estimate(tb, slab, B_pad) <= budget:
            break
        if tb > 8:
            tb = max(8, (tb // 2 // 8) * 8)
        elif slab and use_slab is None:
            slab, tb = False, tb0        # huge batch: recompute y in pass 1
        else:
            # TODO(synk): add a K (n_in) grid axis with an accumulator scratch
            # for very wide inputs instead of failing here.
            raise ValueError(
                f"infomax_ica_forward: tile plan exceeds VMEM budget "
                f"({budget} bytes) for B={B}, n_in={n_in}, n_out={n_out}.")
    nb = B_pad // tb

    # ---- Host-side prep (XLA): zero-pad to the tile grid (exact: zero rows
    # contribute nothing to batch stats since the bias is dropped), transpose
    # W ONCE to (n_in, n_out) and store it bf16, merge gamma/beta.
    xf = x.astype(jnp.float32)
    if B_pad != B:
        xf = jnp.pad(xf, ((0, B_pad - B), (0, 0)))
    Wf = W.astype(jnp.float32)
    if n_out_pad != n_out:
        Wf = jnp.pad(Wf, ((0, n_out_pad - n_out), (0, 0)))
    wt = Wf.T.astype(jnp.bfloat16)                        # (n_in, n_out_pad)
    params = jnp.zeros((8, n_out_pad), jnp.float32)
    params = params.at[0, :n_out].set(gamma.astype(jnp.float32))
    params = params.at[1, :n_out].set(beta.astype(jnp.float32))

    kernel = functools.partial(_infomax_ica_kernel,
                               inv_batch=1.0 / B, use_slab=slab)

    if slab:
        # Pass 1 reads y from the slab; pin the x block so x is NOT re-streamed
        # from HBM during pass 1.
        x_index_map = lambda j, p, i: (i * (1 - p) + (nb - 1) * p, 0)
    else:
        x_index_map = lambda j, p, i: (i, 0)

    scratch = [pltpu.VMEM((1, tn), jnp.float32),          # sum(y)   -> scale
               pltpu.VMEM((1, tn), jnp.float32)]          # sum(y*y) -> shift
    if slab:
        scratch.append(pltpu.VMEM((nb, tb, tn), jnp.float32))

    grid_spec = pltpu.PrefetchScalarGridSpec(
        num_scalar_prefetch=0,
        grid=(nj, 2, nb),               # (feature tiles, pass, batch tiles)
        in_specs=[
            pl.BlockSpec((tb, n_in), x_index_map),              # x (f32)
            pl.BlockSpec((n_in, tn), lambda j, p, i: (0, j)),   # W^T (bf16)
            pl.BlockSpec((8, tn), lambda j, p, i: (0, j)),      # gamma/beta
        ],
        # During pass 0 the output block stays resident at (0, j); it is only
        # flushed after pass 1 has written real data into it.
        out_specs=pl.BlockSpec((tb, tn), lambda j, p, i: (i * p, j)),
        scratch_shapes=scratch,
    )

    out = pl.pallas_call(
        kernel,
        out_shape=jax.ShapeDtypeStruct((B_pad, n_out_pad), jnp.float32),
        grid_spec=grid_spec,
        compiler_params=pltpu.CompilerParams(
            dimension_semantics=("parallel", "arbitrary", "arbitrary"),
            vmem_limit_bytes=int(budget),
        ),
    )(xf, wt, params)

    if B_pad != B or n_out_pad != n_out:
        out = out[:B, :n_out]
    return out


def reference_forward(x, W, b, gamma, beta):
    """Pure-JAX f32 reference matching PyTorch semantics (bias included)."""
    y = x @ W.T + b
    mean = jnp.mean(y, axis=0, keepdims=True)
    var = jnp.mean((y - mean) ** 2, axis=0, keepdims=True)   # biased
    return (y - mean) / jnp.sqrt(var + _BN_EPS) * gamma + beta


if __name__ == "__main__":
    key = jax.random.PRNGKey(0)

    # (B, n, block_b, block_n, use_slab)
    cases = [
        (8, 32, 256, 256, None),      # tiny module-sized shape, single tile
        (256, 256, 128, 128, None),   # tiled: 2 feature tiles x 2 batch tiles
        (100, 200, 64, 128, None),    # awkward shapes -> zero-padding path
        (256, 256, 128, 128, False),  # recompute (no y-slab) fallback path
    ]

    for (B, n, blk_b, blk_n, slab) in cases:
        key, k_x, k_w, k_b = jax.random.split(key, 4)
        x = jax.random.normal(k_x, (B, n), dtype=jnp.float32)

        # Parameter init mirroring the PyTorch __init__:
        #   W1.weight: xavier_normal_; W1.bias: default U(-1/sqrt(n), 1/sqrt(n));
        #   BatchNorm1d affine frozen at weight=1, bias=0.
        xavier_std = jnp.sqrt(2.0 / (n + n))
        W = jax.random.normal(k_w, (n, n), dtype=jnp.float32) * xavier_std
        bound = 1.0 / jnp.sqrt(float(n))
        b = jax.random.uniform(k_b, (n,), minval=-bound, maxval=bound,
                               dtype=jnp.float32)
        gamma = jnp.ones((n,), dtype=jnp.float32)
        beta = jnp.zeros((n,), dtype=jnp.float32)

        out = infomax_ica_forward(x, W, b, gamma, beta,
                                  block_b=blk_b, block_n=blk_n, use_slab=slab)
        out = jax.block_until_ready(out)

        ref = reference_forward(x, W, b, gamma, beta)
        assert out.shape == (B, n)
        max_err = float(jnp.max(jnp.abs(out - ref)))
        # bf16 MXU inputs (f32 accumulation) vs. the pure-f32 reference.
        assert jnp.allclose(out, ref, atol=5e-2, rtol=5e-2), (
            f"mismatch vs reference at B={B}, n={n}: max_err={max_err}")

    print("KERNEL_OK")
</pallas_src>

<mosaic_0001>
module attributes {stable_mosaic.version = 11 : i64} {
  func.func @_infomax_ica_kernel(%arg0: i32, %arg1: i32, %arg2: i32, %arg3: memref<8x32xf32, #tpu.memory_space<vmem>>, %arg4: memref<32x128xbf16, #tpu.memory_space<vmem>>, %arg5: memref<8x128xf32, #tpu.memory_space<vmem>>, %arg6: memref<8x128xf32, #tpu.memory_space<vmem>>, %arg7: memref<1x128xf32, #tpu.memory_space<vmem>>, %arg8: memref<1x128xf32, #tpu.memory_space<vmem>>, %arg9: memref<1x8x128xf32, #tpu.memory_space<vmem>>) attributes {dimension_semantics = [#tpu.dimension_semantics<parallel>, #tpu.dimension_semantics<arbitrary>, #tpu.dimension_semantics<arbitrary>], iteration_bounds = array<i64: 1, 2, 1>, scalar_prefetch = 0 : i64, scratch_operands = 3 : i64, tpu.core_type = #tpu.core_type<tc>, window_params = [{transform_indices = @transform_0, window_bounds = array<i64: 8, 32>}, {transform_indices = @transform_1, window_bounds = array<i64: 32, 128>}, {transform_indices = @transform_2, window_bounds = array<i64: 8, 128>}, {transform_indices = @transform_3, window_bounds = array<i64: 8, 128>}]} {
    %c0_i32 = arith.constant 0 : i32
    %0 = arith.cmpi eq, %arg1, %c0_i32 : i32
    %1 = arith.extui %0 : i1 to i32
    %c0_i32_0 = arith.constant 0 : i32
    %2 = arith.cmpi ne, %1, %c0_i32_0 : i32
    scf.if %2 {
      %c0 = arith.constant 0 : index
      %c0_2 = arith.constant 0 : index
      %6 = vector.load %arg3[%c0, %c0_2] : memref<8x32xf32, #tpu.memory_space<vmem>>, vector<8x32xf32>
      %7 = arith.truncf %6 : vector<8x32xf32> to vector<8x32xbf16>
      %c0_3 = arith.constant 0 : index
      %c0_4 = arith.constant 0 : index
      %8 = vector.load %arg4[%c0_3, %c0_4] : memref<32x128xbf16, #tpu.memory_space<vmem>>, vector<32x128xbf16>
      %cst = arith.constant dense<0.000000e+00> : vector<8x128xf32>
      %9 = tpu.matmul %7, %8, %cst {dimension_numbers = #tpu.dot_dimension_numbers<[1], [0], [0], [1], [0, 0, 1, 1], [], []>} : vector<8x32xbf16>, vector<32x128xbf16>, vector<8x128xf32> -> vector<8x128xf32>
      %c0_i32_5 = arith.constant 0 : i32
      %10 = arith.cmpi eq, %arg2, %c0_i32_5 : i32
      %11 = arith.extui %10 : i1 to i32
      %c0_i32_6 = arith.constant 0 : i32
      %12 = arith.cmpi ne, %11, %c0_i32_6 : i32
      scf.if %12 {
        %cst_19 = arith.constant 0.000000e+00 : f32
        %28 = vector.broadcast %cst_19 : f32 to vector<1x128xf32>
        %c0_20 = arith.constant 0 : index
        %c0_21 = arith.constant 0 : index
        %29 = vector.load %arg7[%c0_20, %c0_21] : memref<1x128xf32, #tpu.memory_space<vmem>>, vector<1x128xf32>
        tpu.vector_store %arg7[%c0_20, %c0_21], %28 {strides = array<i32>} : memref<1x128xf32, #tpu.memory_space<vmem>>, vector<1x128xf32>,
        %cst_22 = arith.constant 0.000000e+00 : f32
        %30 = vector.broadcast %cst_22 : f32 to vector<1x128xf32>
        %c0_23 = arith.constant 0 : index
        %c0_24 = arith.constant 0 : index
        %31 = vector.load %arg8[%c0_23, %c0_24] : memref<1x128xf32, #tpu.memory_space<vmem>>, vector<1x128xf32>
        tpu.vector_store %arg8[%c0_23, %c0_24], %30 {strides = array<i32>} : memref<1x128xf32, #tpu.memory_space<vmem>>, vector<1x128xf32>,
      } else {
      }
      %c0_7 = arith.constant 0 : index
      %c0_8 = arith.constant 0 : index
      %13 = vector.load %arg7[%c0_7, %c0_8] : memref<1x128xf32, #tpu.memory_space<vmem>>, vector<1x128xf32>
      %cst_9 = arith.constant dense<0.000000e+00> : vector<128xf32>
      %14 = vector.multi_reduction <add>, %9, %cst_9 [0] : vector<8x128xf32> to vector<128xf32>
      %15 = vector.shape_cast %14 : vector<128xf32> to vector<1x128xf32>
      %16 = arith.addf %13, %15 : vector<1x128xf32>
      %c0_10 = arith.constant 0 : index
      %c0_11 = arith.constant 0 : index
      %17 = vector.load %arg7[%c0_10, %c0_11] : memref<1x128xf32, #tpu.memory_space<vmem>>, vector<1x128xf32>
      tpu.vector_store %arg7[%c0_10, %c0_11], %16 {strides = array<i32>} : memref<1x128xf32, #tpu.memory_space<vmem>>, vector<1x128xf32>,
      %c0_12 = arith.constant 0 : index
      %c0_13 = arith.constant 0 : index
      %18 = vector.load %arg8[%c0_12, %c0_13] : memref<1x128xf32, #tpu.memory_space<vmem>>, vector<1x128xf32>
      %19 = arith.mulf %9, %9 : vector<8x128xf32>
      %cst_14 = arith.constant dense<0.000000e+00> : vector<128xf32>
      %20 = vector.multi_reduction <add>, %19, %cst_14 [0] : vector<8x128xf32> to vector<128xf32>
      %21 = vector.shape_cast %20 : vector<128xf32> to vector<1x128xf32>
      %22 = arith.addf %18, %21 : vector<1x128xf32>
      %c0_15 = arith.constant 0 : index
      %c0_16 = arith.constant 0 : index
      %23 = vector.load %arg8[%c0_15, %c0_16] : memref<1x128xf32, #tpu.memory_space<vmem>>, vector<1x128xf32>
      tpu.vector_store %arg8[%c0_15, %c0_16], %22 {strides = array<i32>} : memref<1x128xf32, #tpu.memory_space<vmem>>, vector<1x128xf32>,
      %24 = arith.index_cast %arg2 : i32 to index
      %c0_17 = arith.constant 0 : index
      %c0_18 = arith.constant 0 : index
      %25 = vector.load %arg9[%24, %c0_17, %c0_18] : memref<1x8x128xf32, #tpu.memory_space<vmem>>, vector<1x8x128xf32>
      %26 = vector.shape_cast %25 : vector<1x8x128xf32> to vector<8x128xf32>
      %27 = vector.shape_cast %9 : vector<8x128xf32> to vector<1x8x128xf32>
      tpu.vector_store %arg9[%24, %c0_17, %c0_18], %27 {strides = array<i32>} : memref<1x8x128xf32, #tpu.memory_space<vmem>>, vector<1x8x128xf32>,
    } else {
    }
    %c1_i32 = arith.constant 1 : i32
    %3 = arith.cmpi eq, %arg1, %c1_i32 : i32
    %4 = arith.extui %3 : i1 to i32
    %c0_i32_1 = arith.constant 0 : i32
    %5 = arith.cmpi ne, %4, %c0_i32_1 : i32
    scf.if %5 {
      %c0_i32_2 = arith.constant 0 : i32
      %6 = arith.cmpi eq, %arg2, %c0_i32_2 : i32
      %7 = arith.extui %6 : i1 to i32
      %c0_i32_3 = arith.constant 0 : i32
      %8 = arith.cmpi ne, %7, %c0_i32_3 : i32
      scf.if %8 {
        %c0_11 = arith.constant 0 : index
        %c0_12 = arith.constant 0 : index
        %19 = vector.load %arg7[%c0_11, %c0_12] : memref<1x128xf32, #tpu.memory_space<vmem>>, vector<1x128xf32>
        %cst = arith.constant 1.250000e-01 : f32
        %20 = vector.broadcast %cst : f32 to vector<1x128xf32>
        %21 = arith.mulf %19, %20 : vector<1x128xf32>
        %c0_13 = arith.constant 0 : index
        %c0_14 = arith.constant 0 : index
        %22 = vector.load %arg8[%c0_13, %c0_14] : memref<1x128xf32, #tpu.memory_space<vmem>>, vector<1x128xf32>
        %cst_15 = arith.constant 1.250000e-01 : f32
        %23 = vector.broadcast %cst_15 : f32 to vector<1x128xf32>
        %24 = arith.mulf %22, %23 : vector<1x128xf32>
        %25 = arith.mulf %21, %21 : vector<1x128xf32>
        %26 = arith.subf %24, %25 : vector<1x128xf32>
        %cst_16 = arith.constant 0.000000e+00 : f32
        %27 = vector.broadcast %cst_16 : f32 to vector<1x128xf32>
        %28 = arith.maximumf %26, %27 : vector<1x128xf32>
        %cst_17 = arith.constant 9.99999974E-6 : f32
        %29 = vector.broadcast %cst_17 : f32 to vector<1x128xf32>
        %30 = arith.addf %28, %29 : vector<1x128xf32>
        %31 = math.rsqrt %30 : vector<1x128xf32>
        %c0_18 = arith.constant 0 : index
        %c0_19 = arith.constant 0 : index
        %32 = vector.load %arg5[%c0_18, %c0_19] : memref<8x128xf32, #tpu.memory_space<vmem>>, vector<1x128xf32>
        %33 = arith.mulf %32, %31 : vector<1x128xf32>
        %c1 = arith.constant 1 : index
        %c0_20 = arith.constant 0 : index
        %34 = vector.load %arg5[%c1, %c0_20] : memref<8x128xf32, #tpu.memory_space<vmem>>, vector<1x128xf32>
        %35 = arith.mulf %21, %33 : vector<1x128xf32>
        %36 = arith.subf %34, %35 : vector<1x128xf32>
        %c0_21 = arith.constant 0 : index
        %c0_22 = arith.constant 0 : index
        %37 = vector.load %arg7[%c0_21, %c0_22] : memref<1x128xf32, #tpu.memory_space<vmem>>, vector<1x128xf32>
        tpu.vector_store %arg7[%c0_21, %c0_22], %33 {strides = array<i32>} : memref<1x128xf32, #tpu.memory_space<vmem>>, vector<1x128xf32>,
        %c0_23 = arith.constant 0 : index
        %c0_24 = arith.constant 0 : index
        %38 = vector.load %arg8[%c0_23, %c0_24] : memref<1x128xf32, #tpu.memory_space<vmem>>, vector<1x128xf32>
        tpu.vector_store %arg8[%c0_23, %c0_24], %36 {strides = array<i32>} : memref<1x128xf32, #tpu.memory_space<vmem>>, vector<1x128xf32>,
      } else {
      }
      %9 = arith.index_cast %arg2 : i32 to index
      %c0 = arith.constant 0 : index
      %c0_4 = arith.constant 0 : index
      %10 = vector.load %arg9[%9, %c0, %c0_4] : memref<1x8x128xf32, #tpu.memory_space<vmem>>, vector<1x8x128xf32>
      %11 = vector.shape_cast %10 : vector<1x8x128xf32> to vector<8x128xf32>
      %c0_5 = arith.constant 0 : index
      %c0_6 = arith.constant 0 : index
      %12 = vector.load %arg7[%c0_5, %c0_6] : memref<1x128xf32, #tpu.memory_space<vmem>>, vector<1x128xf32>
      %13 = vector.broadcast %12 : vector<1x128xf32> to vector<8x128xf32>
      %14 = arith.mulf %11, %13 : vector<8x128xf32>
      %c0_7 = arith.constant 0 : index
      %c0_8 = arith.constant 0 : index
      %15 = vector.load %arg8[%c0_7, %c0_8] : memref<1x128xf32, #tpu.memory_space<vmem>>, vector<1x128xf32>
      %16 = vector.broadcast %15 : vector<1x128xf32> to vector<8x128xf32>
      %17 = arith.addf %14, %16 : vector<8x128xf32>
      %c0_9 = arith.constant 0 : index
      %c0_10 = arith.constant 0 : index
      %18 = vector.load %arg6[%c0_9, %c0_10] : memref<8x128xf32, #tpu.memory_space<vmem>>, vector<8x128xf32>
      tpu.vector_store %arg6[%c0_9, %c0_10], %17 {strides = array<i32>} : memref<8x128xf32, #tpu.memory_space<vmem>>, vector<8x128xf32>,
    } else {
    }
    return
  }
  func.func @transform_0(%arg0: i32, %arg1: i32, %arg2: i32) -> (i32, i32) {
    %c1_i32 = arith.constant 1 : i32
    %0 = arith.subi %c1_i32, %arg1 : i32
    %1 = arith.muli %arg2, %0 : i32
    %c0_i32 = arith.constant 0 : i32
    %2 = arith.muli %c0_i32, %arg1 : i32
    %3 = arith.addi %1, %2 : i32
    %c0_i32_0 = arith.constant 0 : i32
    %c0_i32_1 = arith.constant 0 : i32
    return %3, %c0_i32_0 : i32, i32
  }
  func.func @transform_1(%arg0: i32, %arg1: i32, %arg2: i32) -> (i32, i32) {
    %c0_i32 = arith.constant 0 : i32
    %c0_i32_0 = arith.constant 0 : i32
    return %c0_i32, %arg0 : i32, i32
  }
  func.func @transform_2(%arg0: i32, %arg1: i32, %arg2: i32) -> (i32, i32) {
    %c0_i32 = arith.constant 0 : i32
    %c0_i32_0 = arith.constant 0 : i32
    return %c0_i32, %arg0 : i32, i32
  }
  func.func @transform_3(%arg0: i32, %arg1: i32, %arg2: i32) -> (i32, i32) {
    %0 = arith.muli %arg2, %arg1 : i32
    %c0_i32 = arith.constant 0 : i32
    return %0, %arg0 : i32, i32
  }
}

</mosaic_0001>

<llo_original>
// kernel: tpu_custom_call.1
$region0: #{tpu_custom_call.1}
  #allocation0 [shape = 'u32[]', space=smem, size = 0x4, offset = 0x4, fixed_abs, tag = 'smem constant byte address 0x4 - core index']
  #allocation1 [shape = 'u32[72,128]{1,0:T(1,128)}', space=vmem, size = 0x9000, scoped, tag = 'internal scratch']
  #allocation2 [shape = 'f32[1,128]{1,0:T(1,128)}', space=vmem, size = 0x200, scoped, tag = 'scratch operand']
  #allocation3 [shape = 'f32[1,128]{1,0:T(1,128)}', space=vmem, size = 0x200, scoped, tag = 'scratch operand']
  #allocation4 [shape = 'f32[1,8,128]{2,1,0:T(8,128)}', space=vmem, size = 0x1000, scoped, tag = 'scratch operand']
  %s0 = inlined_call_operand.hbm [shape: f32[8,32], index: 0, kind: input, shape index: {}]
  %s1 = inlined_call_operand.hbm [shape: bf16[32,128], index: 1, kind: input, shape index: {}]
  %s2 = inlined_call_operand.hbm [shape: f32[8,128], index: 2, kind: input, shape index: {}]
  %s3 = inlined_call_operand.hbm [shape: f32[8,128], index: 3, kind: output, shape index: {}]
  %s4 = sld [smem:[#allocation0]]
  $region73: #{tpu_custom_call.1} parent=0
    _
  %s6 = ssub.s32 1, %s4
  %s7 = scalar_select 0, %s6, %s4
  $region1: #{tpu_custom_call.1} parent=0
    #allocation5 [shape = 'u8[8192]{0}', space=vmem, size = 0x2000, scoped, tag = 'input window, operand 0']
    #allocation6 [shape = 's32[2]{0}', space=sflag, size = 0x8, scoped, tag = 'scoped memory for tpu_custom_call.1']
    #allocation7 [shape = 's32[2]{0}', space=sflag, size = 0x8, scoped, tag = 'scoped memory for tpu_custom_call.1']
    #allocation8 [shape = 'u8[8192]{0}', space=vmem, size = 0x2000, scoped, tag = 'input window, operand 1, single buffered']
    #allocation9 [shape = 's32[1]{0}', space=sflag, size = 0x4, scoped, tag = 'scoped memory for tpu_custom_call.1']
    #allocation10 [shape = 'u8[4096]{0}', space=vmem, size = 0x1000, scoped, tag = 'input window, operand 2, single buffered']
    #allocation11 [shape = 'u8[8192]{0}', space=vmem, size = 0x2000, scoped, tag = 'output window, operand 0']
    %8 = vsyncpa [#allocation6], 0
    %s9 = scalar_lea.sflag [#allocation6], 1
    %10 = vsyncpa %s9, 0
    %11 = vsyncpa [#allocation9], 0
    %12 = vsyncpa [#allocation7], 0
    %s13 = scalar_lea.sflag [#allocation7], 1
    %14 = vsyncpa %s13, 0
    loop: start=0, step=1, limit=4
    $region2: #{tpu_custom_call.1} parent=1 // loop_pre_header
      _
    $region3: #{tpu_custom_call.1} parent=1 // loop_header
      %s16 = sphi 0, %s20
      %p17 = scmp.ge.s32.totalorder %s16, 4
      %s23 = sphi 0, %s42
      %s24 = sphi 0, %s38
      %s25 = sphi 0, %s34
      %s26 = sphi 0, %s23
      %s27 = sphi 0, %s24
      %s28 = sphi 0, %s25
      %s29 = sphi 0, %s26
      %s30 = sphi 0, %s27
      %s31 = sphi 0, %s28
      %s49 = sphi 0, %s51
      %s52 = sphi 0, %s49
      %s53 = sphi 0, %s52
      %s69 = sphi 0, %s53
      %s75 = sphi 0, %s77
      %s78 = sphi 0, %s75
      %s79 = sphi 0, %s78
      %s95 = sphi 0, %s79
      %s101 = sphi 0, %s103
      %s104 = sphi 0, %s101
      %s105 = sphi 0, %s104
      %s121 = sphi 0, %s105
      %s131 = sphi 0, %s133
      %s134 = sphi 0, %s131
      %s135 = sphi 0, %s134
      %s151 = sphi 0, %s135
    $region4: #{tpu_custom_call.1} parent=1 // loop_header_branch
      %19 = sbr.rel (%p17) target = $region8
    $region5: #{tpu_custom_call.1} parent=1 // loop_body
      %s21 = ssub.s32 %s16, 1
      %s22 = ssub.s32 %s16, 2
      %s32 = sadd.s32 1, %s25
      %p33 = scmp.ge.s32.totalorder %s32, 1
      %s34 = scalar_select %p33, 0, %s32
      %s35 = sadd.s32 1, %s24
      %s36 = scalar_select %p33, %s35, %s24
      %p37 = scmp.ge.s32.totalorder %s36, 2
      %s38 = scalar_select %p37, 0, %s36
      %s39 = sadd.s32 1, %s23
      %s40 = scalar_select %p37, %s39, %s23
      %p41 = scmp.ge.s32.totalorder %s40, 1
      %s42 = scalar_select %p41, 0, %s40
      %s43 = ssub.s32 1, %s24
      %s44 = smul.u32 %s25, %s43
      %s45 = ssub.s32 1, %s38
      %s46 = smul.u32 %s34, %s45
      %s47 = ssub.s32 %s44, %s46
      %p48 = scmp.eq.s32.totalorder %s47, 0
      %s50 = sadd.s32 %s49, 1
      %s51 = scalar_select %p48, %s49, %s50
      %p54 = pneg %p48
      %p55 = scmp.eq.s32.totalorder %s16, 1
      %p56 = por %p54, %p55
      %p57 = scmp.ne.s32.totalorder %s49, %s52
      %p58 = scmp.eq.s32.totalorder %s16, 0
      %p59 = por %p57, %p58
      %p60 = scmp.ne.s32.totalorder %s49, %s52
      %p61 = scmp.eq.s32.totalorder %s21, 1
      %p62 = por %p60, %p61
      %p63 = scmp.ne.s32.totalorder %s52, %s53
      %p64 = scmp.eq.s32.totalorder %s21, 0
      %p65 = por %p63, %p64
      %p66 = scmp.ne.s32.totalorder %s52, %s53
      %p67 = scmp.eq.s32.totalorder %s22, 1
      %p68 = por %p66, %p67
      %p70 = scmp.ne.s32.totalorder %s53, %s69
      %p71 = scmp.eq.s32.totalorder %s22, 0
      %p72 = por %p70, %p71
      %s73 = ssub.s32 %s23, %s42
      %p74 = scmp.eq.s32.totalorder %s73, 0
      %s76 = sadd.s32 %s75, 1
      %s77 = scalar_select %p74, %s75, %s76
      %p80 = pneg %p74
      %p81 = scmp.eq.s32.totalorder %s16, 1
      %p82 = por %p80, %p81
      %p83 = scmp.ne.s32.totalorder %s75, %s78
      %p84 = scmp.eq.s32.totalorder %s16, 0
      %p85 = por %p83, %p84
      %p86 = scmp.ne.s32.totalorder %s75, %s78
      %p87 = scmp.eq.s32.totalorder %s21, 1
      %p88 = por %p86, %p87
      %p89 = scmp.ne.s32.totalorder %s78, %s79
      %p90 = scmp.eq.s32.totalorder %s21, 0
      %p91 = por %p89, %p90
      %p92 = scmp.ne.s32.totalorder %s78, %s79
      %p93 = scmp.eq.s32.totalorder %s22, 1
      %p94 = por %p92, %p93
      %p96 = scmp.ne.s32.totalorder %s79, %s95
      %p97 = scmp.eq.s32.totalorder %s22, 0
      %p98 = por %p96, %p97
      %s99 = ssub.s32 %s23, %s42
      %p100 = scmp.eq.s32.totalorder %s99, 0
      %s102 = sadd.s32 %s101, 1
      %s103 = scalar_select %p100, %s101, %s102
      %p106 = pneg %p100
      %p107 = scmp.eq.s32.totalorder %s16, 1
      %p108 = por %p106, %p107
      %p109 = scmp.ne.s32.totalorder %s101, %s104
      %p110 = scmp.eq.s32.totalorder %s16, 0
      %p111 = por %p109, %p110
      %p112 = scmp.ne.s32.totalorder %s101, %s104
      %p113 = scmp.eq.s32.totalorder %s21, 1
      %p114 = por %p112, %p113
      %p115 = scmp.ne.s32.totalorder %s104, %s105
      %p116 = scmp.eq.s32.totalorder %s21, 0
      %p117 = por %p115, %p116
      %p118 = scmp.ne.s32.totalorder %s104, %s105
      %p119 = scmp.eq.s32.totalorder %s22, 1
      %p120 = por %p118, %p119
      %p122 = scmp.ne.s32.totalorder %s105, %s121
      %p123 = scmp.eq.s32.totalorder %s22, 0
      %p124 = por %p122, %p123
      %s125 = smul.u32 %s25, %s24
      %s126 = smul.u32 %s34, %s38
      %s127 = ssub.s32 %s125, %s126
      %s128 = ssub.s32 %s23, %s42
      %s129 = sor.u32 %s127, %s128
      %p130 = scmp.eq.s32.totalorder %s129, 0
      %s132 = sadd.s32 %s131, 1
      %s133 = scalar_select %p130, %s131, %s132
      %p136 = pneg %p130
      %p137 = scmp.eq.s32.totalorder %s16, 1
      %p138 = por %p136, %p137
      %p139 = scmp.ne.s32.totalorder %s131, %s134
      %p140 = scmp.eq.s32.totalorder %s16, 0
      %p141 = por %p139, %p140
      %p142 = scmp.ne.s32.totalorder %s131, %s134
      %p143 = scmp.eq.s32.totalorder %s21, 1
      %p144 = por %p142, %p143
      %p145 = scmp.ne.s32.totalorder %s134, %s135
      %p146 = scmp.eq.s32.totalorder %s21, 0
      %p147 = por %p145, %p146
      %p148 = scmp.ne.s32.totalorder %s134, %s135
      %p149 = scmp.eq.s32.totalorder %s22, 1
      %p150 = por %p148, %p149
      %p152 = scmp.ne.s32.totalorder %s135, %s151
      %p153 = scmp.eq.s32.totalorder %s22, 0
      %p154 = por %p152, %p153
      %p155 = scmp.le.s32.totalorder 1, %s16
      %p156 = scmp.lt.s32.totalorder %s16, 3
      %p157 = pnand %p155, %p156
      %p158 = pneg %p157
      // Predicated region
      $region9: #{tpu_custom_call.1} parent=5 // pred_check
        _
      $region10: #{tpu_custom_call.1} parent=5 // pred_check_branch
        %160 = sbr.rel (%p157) target = $region12
      $region11: #{tpu_custom_call.1} parent=5 // pred_region
        %s161 = ssub.s32 %s16, 1
        // Predicated region
        $region13: #{tpu_custom_call.1} parent=11 // pred_check
          %p162 = pneg %p91
        $region14: #{tpu_custom_call.1} parent=11 // pred_check_branch
          %164 = sbr.rel (%p162) target = $region16
        $region15: #{tpu_custom_call.1} parent=11 // pred_region
          %166 = vsyncadd [#allocation9], 0
          %s167 = smul.addr %s26, 4
          %s168 = scalar_lea.hbm %s1, %s167
          %s169 = sshll.u32 %s168, 4
          %s170 = int_to_ptr.hbm [resolvable:$true] %s169
          %s171 = sshll.u32 [#allocation8], 4
          %s172 = int_to_ptr.vmem [resolvable:$true] %s171
          %177 = dma.hbm_to_vmem [thread:$0]  %s170, 256, %s172, [#allocation9], 64, 64, 4
        $region16: #{tpu_custom_call.1} parent=11 // pred_fallthru
          _
        // Predicated region
        $region17: #{tpu_custom_call.1} parent=11 // pred_check
          %p178 = pneg %p117
        $region18: #{tpu_custom_call.1} parent=11 // pred_check_branch
          %180 = sbr.rel (%p178) target = $region20
        $region19: #{tpu_custom_call.1} parent=11 // pred_region
          %182 = vsyncadd [#allocation9], 0
          %s183 = smul.addr %s26, 8
          %s184 = scalar_lea.hbm %s2, %s183
          %s186 = sshll.u32 %s184, 4
          %s187 = int_to_ptr.hbm [resolvable:$true] %s186
          %s188 = sshll.u32 [#allocation10], 4
          %s189 = int_to_ptr.vmem [resolvable:$true] %s188
          %191 = dma.hbm_to_vmem [thread:$0]  %s187, 128, %s189, [#allocation9]
        $region20: #{tpu_custom_call.1} parent=11 // pred_fallthru
          _
      $region12: #{tpu_custom_call.1} parent=5 // pred_fallthru
        _
      %p192 = scmp.lt.s32.totalorder %s16, 2
      // Predicated region
      $region21: #{tpu_custom_call.1} parent=5 // pred_check
        %p193 = pneg %p192
      $region22: #{tpu_custom_call.1} parent=5 // pred_check_branch
        %195 = sbr.rel (%p193) target = $region24
      $region23: #{tpu_custom_call.1} parent=5 // pred_region
        // Predicated region
        $region25: #{tpu_custom_call.1} parent=23 // pred_check
          %p196 = pneg %p59
        $region26: #{tpu_custom_call.1} parent=23 // pred_check_branch
          %198 = sbr.rel (%p196) target = $region28
        $region27: #{tpu_custom_call.1} parent=23 // pred_region
          %s199 = sand.u32 %s49, 1
          %s200 = scalar_lea.sflag [#allocation6], %s199
          %s201 = sand.u32 %s49, 1
          %s202 = smul.addr %s201, 8
          %s203 = scalar_lea.vmem [#allocation5], %s202
          %s204 = ssub.s32 1, %s24
          %s205 = smul.u32 %s25, %s204
          %207 = vsyncadd %s200, 0
          %s208 = smul.addr %s205, 8
          %s209 = scalar_lea.hbm %s0, %s208
          %s211 = sshll.u32 %s209, 4
          %s212 = int_to_ptr.hbm [resolvable:$true] %s211
          %s213 = sshll.u32 %s203, 4
          %s214 = int_to_ptr.vmem [resolvable:$true] %s213
          %216 = dma.hbm_to_vmem [thread:$0]  %s212, 128, %s214, %s200
        $region28: #{tpu_custom_call.1} parent=23 // pred_fallthru
          _
      $region24: #{tpu_custom_call.1} parent=5 // pred_fallthru
        _
      %p217 = scmp.le.s32.totalorder 1, %s16
      %p218 = scmp.lt.s32.totalorder %s16, 3
      %p219 = pnand %p217, %p218
      %p220 = pneg %p219
      // Predicated region
      $region29: #{tpu_custom_call.1} parent=5 // pred_check
        _
      $region30: #{tpu_custom_call.1} parent=5 // pred_check_branch
        %222 = sbr.rel (%p219) target = $region32
      $region31: #{tpu_custom_call.1} parent=5 // pred_region
        %s223 = ssub.s32 %s16, 1
        %s224 = sand.u32 %s52, 1
        %s225 = scalar_lea.sflag [#allocation6], %s224
        %s226 = sand.u32 %s52, 1
        %s227 = smul.addr %s226, 8
        %s228 = scalar_lea.vmem [#allocation5], %s227
        // Predicated region
        $region33: #{tpu_custom_call.1} parent=31 // pred_check
          %p229 = pneg %p65
        $region34: #{tpu_custom_call.1} parent=31 // pred_check_branch
          %231 = sbr.rel (%p229) target = $region36
        $region35: #{tpu_custom_call.1} parent=31 // pred_region
          %233 = dma.done %s225, 128
        $region36: #{tpu_custom_call.1} parent=31 // pred_fallthru
          _
        // Predicated region
        $region37: #{tpu_custom_call.1} parent=31 // pred_check
          %p234 = pneg %p91
        $region38: #{tpu_custom_call.1} parent=31 // pred_check_branch
          %236 = sbr.rel (%p234) target = $region40
        $region39: #{tpu_custom_call.1} parent=31 // pred_region
          %238 = dma.done [#allocation9], 256
        $region40: #{tpu_custom_call.1} parent=31 // pred_fallthru
          _
        // Predicated region
        $region41: #{tpu_custom_call.1} parent=31 // pred_check
          %p239 = pneg %p117
        $region42: #{tpu_custom_call.1} parent=31 // pred_check_branch
          %241 = sbr.rel (%p239) target = $region44
        $region43: #{tpu_custom_call.1} parent=31 // pred_region
          %243 = dma.done [#allocation9], 128
        $region44: #{tpu_custom_call.1} parent=31 // pred_fallthru
          _
        %s244 = sand.u32 %s52, 1
        %s245 = scalar_lea.sflag [#allocation6], %s244
        %s246 = sand.u32 %s52, 1
        %s247 = smul.addr %s246, 8
        %s248 = scalar_lea.vmem [#allocation5], %s247
        %p249 = pneg %p65
        %p250 = pneg %p62
        %p251 = pneg %p91
        %p252 = pneg %p88
        %p253 = pneg %p117
        %p254 = pneg %p114
        %p255 = pneg %p147
        %p256 = pneg %p144
        %s257 = sand.u32 %s134, 1
        %s258 = scalar_lea.sflag [#allocation7], %s257
        %s259 = sand.u32 %s134, 1
        %s260 = smul.addr %s259, 8
        %s261 = scalar_lea.vmem [#allocation11], %s260
        %s262 = ssub.s32 1, %s27
        %s263 = smul.u32 %s28, %s262
        %s264 = smul.u32 %s28, %s27
        %p266 = scmp.eq.s32.totalorder %s27, 0
        // Predicated region
        $region45: #{tpu_custom_call.1} parent=31 // pred_check
          %p267 = pneg %p266
        $region46: #{tpu_custom_call.1} parent=31 // pred_check_branch
          %269 = sbr.rel (%p267) target = $region48
        $region47: #{tpu_custom_call.1} parent=31 // pred_region
          %v270 = vld [vmem:[%s228] sm:$0xff]
          %v271 = vpack.c.bf16 %v270, %v270
          %v272 = vld [vmem:[#allocation8] sm:$0xf]
          %v273 = vld [vmem:[#allocation8 + $0x4] sm:$0xf]
          %v274 = vld [vmem:[#allocation8 + $0x8] sm:$0xf]
          %v275 = vld [vmem:[#allocation8 + $0xc] sm:$0xf]
          %v280 = vunpack.c.l.b16 %v272
          %v281 = vunpack.c.l.b16 %v273
          %v282 = vunpack.c.l.b16 %v274
          %v283 = vunpack.c.l.b16 %v275
          %v284 = vpack.c.b16 %v281, %v280
          %v285 = vpack.c.b16 %v283, %v282
          %vm288 = vcmask 261120
          %v290 = vsel %vm288, %v271, 0
          %292 = vmatpush.bf16.msra.mxu0 0
          %293 = vmatpush.bf16.msra.mxu0 0
          %294 = vmatpush.bf16.msra.mxu0 0
          %295 = vmatpush.bf16.msra.mxu0 0
          %296 = vmatpush.bf16.msra.mxu0 0
          %297 = vmatpush.bf16.msra.mxu0 0
          %298 = vmatpush.bf16.msra.mxu0 %v285
          %299 = vmatpush.bf16.msra.mxu0 %v284
          %300 = vmatmul.bf16.gmra.mxu0 %v290
          %v301 = vpop.f32.mrf.mxu0
          %v302 = vadd.f32 0.0, %v301
          %v303 = vpop.f32.mrf.mxu0
          %304 = vdwg.mxu0
          %p305 = scmp.eq.s32.totalorder %s28, 0
          // Predicated region
          $region49: #{tpu_custom_call.1} parent=47 // pred_check
            %p306 = pneg %p305
          $region50: #{tpu_custom_call.1} parent=47 // pred_check_branch
            %308 = sbr.rel (%p306) target = $region52
          $region51: #{tpu_custom_call.1} parent=47 // pred_region
            %309 = vst [vmem:[#allocation2] sm:$0x1] 0.0
            %310 = vst [vmem:[#allocation3] sm:$0x1] 0.0
          $region52: #{tpu_custom_call.1} parent=47 // pred_fallthru
            _
          %v311 = vld [vmem:[#allocation2] sm:$0x1]
          %v312 = vrot.slane %v302, 4
          %v313 = vadd.f32 %v302, %v312
          %v314 = vrot.slane %v313, 2
          %v315 = vadd.f32 %v313, %v314
          %v316 = vrot.slane %v315, 1
          %v317 = vadd.f32 %v315, %v316
          %v318 = vadd.f32 %v311, %v317
          %319 = vst [vmem:[#allocation2] sm:$0x1] %v318
          %v320 = vld [vmem:[#allocation3] sm:$0x1]
          %v321 = vmul.f32 %v302, %v302
          %v322 = vrot.slane %v321, 4
          %v323 = vadd.f32 %v321, %v322
          %v324 = vrot.slane %v323, 2
          %v325 = vadd.f32 %v323, %v324
          %v326 = vrot.slane %v325, 1
          %v327 = vadd.f32 %v325, %v326
          %v328 = vadd.f32 %v320, %v327
          %329 = vst [vmem:[#allocation3] sm:$0x1] %v328
          %s330 = smul.u32 %s28, 8
          %s331 = scalar_lea.vmem [#allocation4], %s330
          %332 = vst [vmem:[%s331] sm:$0xff] %v302
        $region48: #{tpu_custom_call.1} parent=31 // pred_fallthru
          _
        %p333 = scmp.eq.s32.totalorder %s27, 1
        // Predicated region
        $region53: #{tpu_custom_call.1} parent=31 // pred_check
          %p334 = pneg %p333
        $region54: #{tpu_custom_call.1} parent=31 // pred_check_branch
          %336 = sbr.rel (%p334) target = $region56
        $region55: #{tpu_custom_call.1} parent=31 // pred_region
          %p337 = scmp.eq.s32.totalorder %s28, 0
          // Predicated region
          $region57: #{tpu_custom_call.1} parent=55 // pred_check
            %p338 = pneg %p337
          $region58: #{tpu_custom_call.1} parent=55 // pred_check_branch
            %340 = sbr.rel (%p338) target = $region60
          $region59: #{tpu_custom_call.1} parent=55 // pred_region
            %v341 = vld [vmem:[#allocation2] sm:$0x1]
            %v342 = vmul.f32 %v341, 0.125
            %v343 = vld [vmem:[#allocation3] sm:$0x1]
            %v344 = vmul.f32 %v343, 0.125
            %v345 = vmul.f32 %v342, %v342
            %v346 = vsub.f32 %v344, %v345
            %v347 = vmax.f32 %v346, 0.0
            %v348 = vadd.f32 %v347, 1e-05
            %v349 = vrsqrt.pop %v348
            %v350 = vmul.f32 %v349, %v348
            %v351 = vmul.f32 %v350, %v349
            %v352 = vmul.f32 0.5, %v351
            %v353 = vsub.f32 1.5, %v352
            %v354 = vmul.f32 %v349, %v353
            %vm355 = vweird.f32 %v348
            %vm356 = vweird.f32 %v349
            %vm357 = vmor %vm355, %vm356
            %v358 = vsel %vm357, %v349, %v354
            %v359 = vld [vmem:[#allocation10] sm:$0x1]
            %v360 = vmul.f32 %v359, %v358
            %v361 = vld [vmem:[#allocation10 + $0x1] sm:$0x1]
            %v362 = vmul.f32 %v342, %v360
            %v363 = vsub.f32 %v361, %v362
            %364 = vst [vmem:[#allocation2] sm:$0x1] %v360
            %365 = vst [vmem:[#allocation3] sm:$0x1] %v363
          $region60: #{tpu_custom_call.1} parent=55 // pred_fallthru
            _
          %s366 = smul.u32 %s28, 8
          %s367 = scalar_lea.vmem [#allocation4], %s366
          %v368 = vld [vmem:[%s367] sm:$0xff]
          %v369 = vld [vmem:[#allocation2] sm:$0x1]
          %v371 = vperm.slane %v369, 0
          %v373 = vmul.f32 %v368, %v371
          %v374 = vld [vmem:[#allocation3] sm:$0x1]
          %v376 = vperm.slane %v374, 0
          %v378 = vadd.f32 %v373, %v376
          %379 = vst [vmem:[%s261] sm:$0xff] %v378
        $region56: #{tpu_custom_call.1} parent=31 // pred_fallthru
          _
        %s380 = sand.u32 %s134, 1
        %s381 = scalar_lea.sflag [#allocation7], %s380
        %s382 = sand.u32 %s134, 1
        %s383 = smul.addr %s382, 8
        %s384 = scalar_lea.vmem [#allocation11], %s383
        // Predicated region
        $region61: #{tpu_custom_call.1} parent=31 // pred_check
          %p385 = pneg %p144
        $region62: #{tpu_custom_call.1} parent=31 // pred_check_branch
          %387 = sbr.rel (%p385) target = $region64
        $region63: #{tpu_custom_call.1} parent=31 // pred_region
          %s388 = smul.u32 %s28, %s27
          %390 = vsyncadd %s381, 0
          %s391 = sadd.s32 %s26, %s388
          %s392 = smul.addr %s391, 8
          %s393 = scalar_lea.hbm %s3, %s392
          %s395 = sshll.u32 %s384, 4
          %s396 = int_to_ptr.vmem [resolvable:$true] %s395
          %s397 = sshll.u32 %s393, 4
          %s398 = int_to_ptr.hbm [resolvable:$true] %s397
          %400 = dma.vmem_to_hbm [thread:$0]  %s396, 128, %s398, %s381
        $region64: #{tpu_custom_call.1} parent=31 // pred_fallthru
          _
      $region32: #{tpu_custom_call.1} parent=5 // pred_fallthru
        _
      %p401 = scmp.le.s32.totalorder 2, %s16
      // Predicated region
      $region65: #{tpu_custom_call.1} parent=5 // pred_check
        %p402 = pneg %p401
      $region66: #{tpu_custom_call.1} parent=5 // pred_check_branch
        %404 = sbr.rel (%p402) target = $region68
      $region67: #{tpu_custom_call.1} parent=5 // pred_region
        %s405 = ssub.s32 %s16, 2
        // Predicated region
        $region69: #{tpu_custom_call.1} parent=67 // pred_check
          %p406 = pneg %p150
        $region70: #{tpu_custom_call.1} parent=67 // pred_check_branch
          %408 = sbr.rel (%p406) target = $region72
        $region71: #{tpu_custom_call.1} parent=67 // pred_region
          %s409 = sand.u32 %s135, 1
          %s410 = scalar_lea.sflag [#allocation7], %s409
          %s411 = sand.u32 %s135, 1
          %s412 = smul.addr %s411, 8
          %s413 = scalar_lea.vmem [#allocation11], %s412
          %415 = dma.done %s410, 128
        $region72: #{tpu_custom_call.1} parent=67 // pred_fallthru
          _
      $region68: #{tpu_custom_call.1} parent=5 // pred_fallthru
        _
    $region6: #{tpu_custom_call.1} parent=1 // loop_footer
      %s20 = sadd.s32 1, %s16
    $region7: #{tpu_custom_call.1} parent=1 // loop_footer_branch
      %15 = sbr.rel target = $region3
    $region8: #{tpu_custom_call.1} parent=1 // loop_exit
      _
    %416 = vsyncpa [#allocation6], 1
    %s417 = scalar_lea.sflag [#allocation6], 1
    %418 = vsyncpa %s417, 1
    %419 = vsyncpa [#allocation9], 1
    %420 = vsyncpa [#allocation7], 1
    %s421 = scalar_lea.sflag [#allocation7], 1
    %422 = vsyncpa %s421, 1

</llo_original>
